<compile_context>
chip_gen: v7x
topology: tpu7x:2x2x1
jax: 0.10.0
libtpu: 0.0.40
codegen_flags: <defaults>
</compile_context>

<pallas_src>
import functools

import jax
import jax.numpy as jnp
from jax.experimental import pallas as pl
from jax.experimental.pallas import tpu as pltpu


# Padded layer widths (lane/sublane friendly).  Real widths are 100 / 10 / 1;
# padded lanes carry exact zeros (zero weights/biases, tanh(0)=0) and cannot
# perturb the sliced result.
H1P = 128   # 100 -> 128
H2P = 64    # 10  -> 64
OUTP = 8    # 1   -> 8


# --------------------------------------------------------------------------- #
# Kernel: one branch, one row-block. 3 matmuls (bf16 MXU, f32 acc) + 2 tanh.
# --------------------------------------------------------------------------- #
def prefnet_kernel(x_ref, w1_ref, b1_ref, w2_ref, b2_ref, w3_ref, b3_ref, o_ref):
    h = jnp.tanh(
        jnp.dot(x_ref[...], w1_ref[...], preferred_element_type=jnp.float32)
        + b1_ref[...])
    h = jnp.tanh(
        jnp.dot(h.astype(jnp.bfloat16), w2_ref[...],
                preferred_element_type=jnp.float32)
        + b2_ref[...])
    o_ref[...] = (
        jnp.dot(h.astype(jnp.bfloat16), w3_ref[...],
                preferred_element_type=jnp.float32)
        + b3_ref[...]
    ).astype(o_ref.dtype)


# --------------------------------------------------------------------------- #
# Packing helpers (plain JAX, fused under the forward's jit).
# --------------------------------------------------------------------------- #
def _round_up(n, m):
    return ((n + m - 1) // m) * m


def _pad_to(a, shape):
    return jnp.pad(a, [(0, t - s) for s, t in zip(a.shape, shape)])


def pack_params(params_a, params_b, n_in):
    """Stack the two branches' sampled (W [in,out], b [1,out]) into [2,...] slabs.

    Weights are cast to bf16 (MXU operands); biases stay f32 (VPU add path).
    Pure pad + stack — no block-diagonal scatter — so it fuses cleanly.
    """
    w1a, b1a, w2a, b2a, w3a, b3a = params_a
    w1b, b1b, w2b, b2b, w3b, b3b = params_b
    w1 = jnp.stack([_pad_to(w1a, (n_in, H1P)),
                    _pad_to(w1b, (n_in, H1P))]).astype(jnp.bfloat16)
    b1 = jnp.stack([_pad_to(b1a, (1, H1P)), _pad_to(b1b, (1, H1P))])
    w2 = jnp.stack([_pad_to(w2a, (H1P, H2P)),
                    _pad_to(w2b, (H1P, H2P))]).astype(jnp.bfloat16)
    b2 = jnp.stack([_pad_to(b2a, (1, H2P)), _pad_to(b2b, (1, H2P))])
    w3 = jnp.stack([_pad_to(w3a, (H2P, OUTP)),
                    _pad_to(w3b, (H2P, OUTP))]).astype(jnp.bfloat16)
    b3 = jnp.stack([_pad_to(b3a, (1, OUTP)), _pad_to(b3b, (1, OUTP))])
    return w1, b1, w2, b2, w3, b3


# --------------------------------------------------------------------------- #
# Wrapper: stack the two inputs on a branch axis, launch one kernel, slice.
# --------------------------------------------------------------------------- #
@functools.partial(jax.jit, static_argnames=("block_rows",))
def prefnet_forward(x1, x2, params_a, params_b, *, block_rows=1024):
    """params_* = (W1, b1, W2, b2, W3, b3) with W as [in, out] and b as [1, out]."""
    B, n_in = x1.shape

    # Per-branch row tiling: fewest, largest blocks (grid-step overhead ~0.35us
    # dominates small blocks).  The leading branch axis of size 2 keeps the
    # grid product even so both of v7x's TensorCores get work.
    tb = _round_up(min(block_rows, B), 8)
    rows_p = _round_up(B, tb)

    x = jnp.stack([x1, x2]).astype(jnp.bfloat16)            # [2, B, n_in]
    if rows_p != B:
        x = jnp.pad(x, ((0, 0), (0, rows_p - B), (0, 0)))

    w1, b1, w2, b2, w3, b3 = pack_params(params_a, params_b, n_in)

    def bcast_spec(shape):
        # Whole per-branch slab; re-DMAed only when the branch index changes.
        return pl.BlockSpec((None,) + shape, lambda br, i: (br, 0, 0))

    weight_bytes = sum(a.size * a.dtype.itemsize for a in (w1, b1, w2, b2, w3, b3))
    cost = pl.CostEstimate(
        flops=2 * 2 * rows_p * (n_in * H1P + H1P * H2P + H2P * OUTP),
        transcendentals=2 * rows_p * (H1P + H2P),
        bytes_accessed=x.size * x.dtype.itemsize
        + 2 * rows_p * OUTP * 4
        + weight_bytes,
    )

    out = pl.pallas_call(
        prefnet_kernel,
        out_shape=jax.ShapeDtypeStruct((2, rows_p, OUTP), jnp.float32),
        grid=(2, rows_p // tb),                              # (branch, row block)
        in_specs=[
            pl.BlockSpec((None, tb, n_in), lambda br, i: (br, i, 0)),
            bcast_spec((n_in, H1P)), bcast_spec((1, H1P)),
            bcast_spec((H1P, H2P)), bcast_spec((1, H2P)),
            bcast_spec((H2P, OUTP)), bcast_spec((1, OUTP)),
        ],
        out_specs=pl.BlockSpec((None, tb, OUTP), lambda br, i: (br, i, 0)),
        compiler_params=pltpu.CompilerParams(
            dimension_semantics=("parallel", "parallel")),
        cost_estimate=cost,
    )(x, w1, b1, w2, b2, w3, b3)

    out1 = out[0, :B, 0:1]            # branch A, real output lane 0
    out2 = out[1, :B, 0:1]            # branch B, real output lane 0
    return out1, out2


# --------------------------------------------------------------------------- #
# BayesLinear init + reparameterized sampling (deterministic, wrapper-side).
# --------------------------------------------------------------------------- #
def init_bayes_linear(key, in_features, out_features, prior_sigma=0.1):
    k_w, k_b = jax.random.split(key)
    bound_w = 1.0 / jnp.sqrt(in_features)
    weight_mu = jax.random.uniform(
        k_w, (out_features, in_features), jnp.float32, -bound_w, bound_w)
    weight_log_sigma = jnp.full(
        (out_features, in_features), jnp.log(prior_sigma), jnp.float32)
    bias_mu = jax.random.uniform(
        k_b, (out_features,), jnp.float32, -bound_w, bound_w)
    bias_log_sigma = jnp.full((out_features,), jnp.log(prior_sigma), jnp.float32)
    return dict(weight_mu=weight_mu, weight_log_sigma=weight_log_sigma,
                bias_mu=bias_mu, bias_log_sigma=bias_log_sigma)


def sample_bayes_linear(key, layer):
    """Reparameterized sample; returns (W [in,out], b [1,out]) for the kernel."""
    k_w, k_b = jax.random.split(key)
    eps_w = jax.random.normal(k_w, layer["weight_mu"].shape, jnp.float32)
    eps_b = jax.random.normal(k_b, layer["bias_mu"].shape, jnp.float32)
    weight = layer["weight_mu"] + jnp.exp(layer["weight_log_sigma"]) * eps_w
    bias = layer["bias_mu"] + jnp.exp(layer["bias_log_sigma"]) * eps_b
    return weight.T, bias.reshape(1, -1)


# --------------------------------------------------------------------------- #
# References.
# --------------------------------------------------------------------------- #
def reference_forward(x1, x2, params_a, params_b):
    """Pure f32 reference (original module semantics)."""
    def fwd(x, p):
        w1, b1, w2, b2, w3, b3 = p
        h = jnp.tanh(x @ w1 + b1)
        h = jnp.tanh(h @ w2 + b2)
        return h @ w3 + b3
    return fwd(x1, params_a), fwd(x2, params_b)


def reference_forward_bf16(x1, x2, params_a, params_b):
    """Kernel-precision reference: bf16 MXU operands, f32 accumulate/bias/tanh."""
    def dot(a, b):
        return jnp.dot(a.astype(jnp.bfloat16), b.astype(jnp.bfloat16),
                       preferred_element_type=jnp.float32)
    def fwd(x, p):
        w1, b1, w2, b2, w3, b3 = p
        h = jnp.tanh(dot(x, w1) + b1)
        h = jnp.tanh(dot(h, w2) + b2)
        return dot(h, w3) + b3
    return fwd(x1, params_a), fwd(x2, params_b)


if __name__ == "__main__":
    key = jax.random.PRNGKey(0)
    B, n_input = 8, 32

    (k_x1, k_x2, k_fc1, k_fc2, k_fc3,
     k_s1a, k_s2a, k_s3a, k_s1b, k_s2b, k_s3b) = jax.random.split(key, 11)

    x1 = jax.random.normal(k_x1, (B, n_input), jnp.float32)
    x2 = jax.random.normal(k_x2, (B, n_input), jnp.float32)

    fc1 = init_bayes_linear(k_fc1, n_input, 100)
    fc2 = init_bayes_linear(k_fc2, 100, 10)
    fc3 = init_bayes_linear(k_fc3, 10, 1)

    # torchbnn resamples weights on every BayesLinear forward call, so the two
    # Siamese branches get independent samples.
    params_a = (*sample_bayes_linear(k_s1a, fc1),
                *sample_bayes_linear(k_s2a, fc2),
                *sample_bayes_linear(k_s3a, fc3))
    params_b = (*sample_bayes_linear(k_s1b, fc1),
                *sample_bayes_linear(k_s2b, fc2),
                *sample_bayes_linear(k_s3b, fc3))

    out1, out2 = prefnet_forward(x1, x2, params_a, params_b)
    out1, out2 = jax.block_until_ready((out1, out2))

    assert out1.shape == (B, 1) and out2.shape == (B, 1)

    # Matched-precision reference (same bf16 MXU / f32-accumulate math).
    m1, m2 = reference_forward_bf16(x1, x2, params_a, params_b)
    assert jnp.allclose(out1, m1, atol=5e-3, rtol=5e-3)
    assert jnp.allclose(out2, m2, atol=5e-3, rtol=5e-3)

    # Loose check against the pure-f32 reference (original module semantics).
    r1, r2 = reference_forward(x1, x2, params_a, params_b)
    assert jnp.allclose(out1, r1, atol=1e-1, rtol=1e-1)
    assert jnp.allclose(out2, r2, atol=1e-1, rtol=1e-1)

    print("KERNEL_OK")
</pallas_src>

<mosaic_0001>
module attributes {stable_mosaic.version = 11 : i64} {
  func.func @prefnet_kernel(%arg0: i32, %arg1: i32, %arg2: memref<1x8x32xbf16, #tpu.memory_space<vmem>>, %arg3: memref<1x32x128xbf16, #tpu.memory_space<vmem>>, %arg4: memref<1x1x128xf32, #tpu.memory_space<vmem>>, %arg5: memref<1x128x64xbf16, #tpu.memory_space<vmem>>, %arg6: memref<1x1x64xf32, #tpu.memory_space<vmem>>, %arg7: memref<1x64x8xbf16, #tpu.memory_space<vmem>>, %arg8: memref<1x1x8xf32, #tpu.memory_space<vmem>>, %arg9: memref<1x8x8xf32, #tpu.memory_space<vmem>>) attributes {dimension_semantics = [#tpu.dimension_semantics<parallel>, #tpu.dimension_semantics<parallel>], iteration_bounds = array<i64: 2, 1>, scalar_prefetch = 0 : i64, scratch_operands = 0 : i64, tpu.core_type = #tpu.core_type<tc>, window_params = [{transform_indices = @transform_0, window_bounds = array<i64: 1, 8, 32>}, {transform_indices = @transform_1, window_bounds = array<i64: 1, 32, 128>}, {transform_indices = @transform_2, window_bounds = array<i64: 1, 1, 128>}, {transform_indices = @transform_3, window_bounds = array<i64: 1, 128, 64>}, {transform_indices = @transform_4, window_bounds = array<i64: 1, 1, 64>}, {transform_indices = @transform_5, window_bounds = array<i64: 1, 64, 8>}, {transform_indices = @transform_6, window_bounds = array<i64: 1, 1, 8>}, {transform_indices = @transform_7, window_bounds = array<i64: 1, 8, 8>}]} {
    %c0 = arith.constant 0 : index
    %c0_0 = arith.constant 0 : index
    %c0_1 = arith.constant 0 : index
    %0 = vector.load %arg2[%c0, %c0_0, %c0_1] : memref<1x8x32xbf16, #tpu.memory_space<vmem>>, vector<1x8x32xbf16>
    %1 = vector.shape_cast %0 : vector<1x8x32xbf16> to vector<8x32xbf16>
    %c0_2 = arith.constant 0 : index
    %c0_3 = arith.constant 0 : index
    %c0_4 = arith.constant 0 : index
    %2 = vector.load %arg3[%c0_2, %c0_3, %c0_4] : memref<1x32x128xbf16, #tpu.memory_space<vmem>>, vector<1x32x128xbf16>
    %3 = vector.shape_cast %2 : vector<1x32x128xbf16> to vector<32x128xbf16>
    %cst = arith.constant dense<0.000000e+00> : vector<8x128xf32>
    %4 = tpu.matmul %1, %3, %cst {dimension_numbers = #tpu.dot_dimension_numbers<[1], [0], [0], [1], [0, 0, 1, 1], [], []>} : vector<8x32xbf16>, vector<32x128xbf16>, vector<8x128xf32> -> vector<8x128xf32>
    %c0_5 = arith.constant 0 : index
    %c0_6 = arith.constant 0 : index
    %c0_7 = arith.constant 0 : index
    %5 = vector.load %arg4[%c0_5, %c0_6, %c0_7] : memref<1x1x128xf32, #tpu.memory_space<vmem>>, vector<1x1x128xf32>
    %6 = vector.shape_cast %5 : vector<1x1x128xf32> to vector<1x128xf32>
    %7 = vector.broadcast %6 : vector<1x128xf32> to vector<8x128xf32>
    %8 = arith.addf %4, %7 : vector<8x128xf32>
    %9 = math.tanh %8 : vector<8x128xf32>
    %10 = arith.truncf %9 : vector<8x128xf32> to vector<8x128xbf16>
    %c0_8 = arith.constant 0 : index
    %c0_9 = arith.constant 0 : index
    %c0_10 = arith.constant 0 : index
    %11 = vector.load %arg5[%c0_8, %c0_9, %c0_10] : memref<1x128x64xbf16, #tpu.memory_space<vmem>>, vector<1x128x64xbf16>
    %12 = vector.shape_cast %11 : vector<1x128x64xbf16> to vector<128x64xbf16>
    %cst_11 = arith.constant dense<0.000000e+00> : vector<8x64xf32>
    %13 = tpu.matmul %10, %12, %cst_11 {dimension_numbers = #tpu.dot_dimension_numbers<[1], [0], [0], [1], [0, 0, 1, 1], [], []>} : vector<8x128xbf16>, vector<128x64xbf16>, vector<8x64xf32> -> vector<8x64xf32>
    %c0_12 = arith.constant 0 : index
    %c0_13 = arith.constant 0 : index
    %c0_14 = arith.constant 0 : index
    %14 = vector.load %arg6[%c0_12, %c0_13, %c0_14] : memref<1x1x64xf32, #tpu.memory_space<vmem>>, vector<1x1x64xf32>
    %15 = vector.shape_cast %14 : vector<1x1x64xf32> to vector<1x64xf32>
    %16 = vector.broadcast %15 : vector<1x64xf32> to vector<8x64xf32>
    %17 = arith.addf %13, %16 : vector<8x64xf32>
    %18 = math.tanh %17 : vector<8x64xf32>
    %19 = arith.truncf %18 : vector<8x64xf32> to vector<8x64xbf16>
    %c0_15 = arith.constant 0 : index
    %c0_16 = arith.constant 0 : index
    %c0_17 = arith.constant 0 : index
    %20 = vector.load %arg7[%c0_15, %c0_16, %c0_17] : memref<1x64x8xbf16, #tpu.memory_space<vmem>>, vector<1x64x8xbf16>
    %21 = vector.shape_cast %20 : vector<1x64x8xbf16> to vector<64x8xbf16>
    %cst_18 = arith.constant dense<0.000000e+00> : vector<8x8xf32>
    %22 = tpu.matmul %19, %21, %cst_18 {dimension_numbers = #tpu.dot_dimension_numbers<[1], [0], [0], [1], [0, 0, 1, 1], [], []>} : vector<8x64xbf16>, vector<64x8xbf16>, vector<8x8xf32> -> vector<8x8xf32>
    %c0_19 = arith.constant 0 : index
    %c0_20 = arith.constant 0 : index
    %c0_21 = arith.constant 0 : index
    %23 = vector.load %arg8[%c0_19, %c0_20, %c0_21] : memref<1x1x8xf32, #tpu.memory_space<vmem>>, vector<1x1x8xf32>
    %24 = vector.shape_cast %23 : vector<1x1x8xf32> to vector<1x8xf32>
    %25 = vector.broadcast %24 : vector<1x8xf32> to vector<8x8xf32>
    %26 = arith.addf %22, %25 : vector<8x8xf32>
    %c0_22 = arith.constant 0 : index
    %c0_23 = arith.constant 0 : index
    %c0_24 = arith.constant 0 : index
    %27 = vector.load %arg9[%c0_22, %c0_23, %c0_24] : memref<1x8x8xf32, #tpu.memory_space<vmem>>, vector<1x8x8xf32>
    %28 = vector.shape_cast %27 : vector<1x8x8xf32> to vector<8x8xf32>
    %29 = vector.shape_cast %26 : vector<8x8xf32> to vector<1x8x8xf32>
    tpu.vector_store %arg9[%c0_22, %c0_23, %c0_24], %29 {strides = array<i32>} : memref<1x8x8xf32, #tpu.memory_space<vmem>>, vector<1x8x8xf32>,
    return
  }
  func.func @transform_0(%arg0: i32, %arg1: i32) -> (i32, i32, i32) {
    %c0_i32 = arith.constant 0 : i32
    %c0_i32_0 = arith.constant 0 : i32
    return %arg0, %arg1, %c0_i32 : i32, i32, i32
  }
  func.func @transform_1(%arg0: i32, %arg1: i32) -> (i32, i32, i32) {
    %c0_i32 = arith.constant 0 : i32
    %c0_i32_0 = arith.constant 0 : i32
    %c0_i32_1 = arith.constant 0 : i32
    return %arg0, %c0_i32, %c0_i32_0 : i32, i32, i32
  }
  func.func @transform_2(%arg0: i32, %arg1: i32) -> (i32, i32, i32) {
    %c0_i32 = arith.constant 0 : i32
    %c0_i32_0 = arith.constant 0 : i32
    %c0_i32_1 = arith.constant 0 : i32
    return %arg0, %c0_i32, %c0_i32_0 : i32, i32, i32
  }
  func.func @transform_3(%arg0: i32, %arg1: i32) -> (i32, i32, i32) {
    %c0_i32 = arith.constant 0 : i32
    %c0_i32_0 = arith.constant 0 : i32
    %c0_i32_1 = arith.constant 0 : i32
    return %arg0, %c0_i32, %c0_i32_0 : i32, i32, i32
  }
  func.func @transform_4(%arg0: i32, %arg1: i32) -> (i32, i32, i32) {
    %c0_i32 = arith.constant 0 : i32
    %c0_i32_0 = arith.constant 0 : i32
    %c0_i32_1 = arith.constant 0 : i32
    return %arg0, %c0_i32, %c0_i32_0 : i32, i32, i32
  }
  func.func @transform_5(%arg0: i32, %arg1: i32) -> (i32, i32, i32) {
    %c0_i32 = arith.constant 0 : i32
    %c0_i32_0 = arith.constant 0 : i32
    %c0_i32_1 = arith.constant 0 : i32
    return %arg0, %c0_i32, %c0_i32_0 : i32, i32, i32
  }
  func.func @transform_6(%arg0: i32, %arg1: i32) -> (i32, i32, i32) {
    %c0_i32 = arith.constant 0 : i32
    %c0_i32_0 = arith.constant 0 : i32
    %c0_i32_1 = arith.constant 0 : i32
    return %arg0, %c0_i32, %c0_i32_0 : i32, i32, i32
  }
  func.func @transform_7(%arg0: i32, %arg1: i32) -> (i32, i32, i32) {
    %c0_i32 = arith.constant 0 : i32
    %c0_i32_0 = arith.constant 0 : i32
    return %arg0, %arg1, %c0_i32 : i32, i32, i32
  }
}

</mosaic_0001>

<llo_original>
// kernel: prefnet_forward.1
$region0: #{prefnet_forward.1}
  #allocation0 [shape = 'u32[]', space=smem, size = 0x4, offset = 0x4, fixed_abs, tag = 'smem constant byte address 0x4 - core index']
  #allocation1 [shape = 'u32[144,128]{1,0:T(1,128)}', space=vmem, size = 0x12000, scoped, tag = 'internal scratch']
  %s0 = inlined_call_operand.vmem [shape: bf16[2,8,32], index: 0, kind: input, shape index: {}]
  %s1 = inlined_call_operand.vmem [shape: bf16[2,32,128], index: 1, kind: input, shape index: {}]
  %s2 = inlined_call_operand.vmem [shape: f32[2,1,128], index: 2, kind: input, shape index: {}]
  %s3 = inlined_call_operand.vmem [shape: bf16[2,128,64], index: 3, kind: input, shape index: {}]
  %s4 = inlined_call_operand.vmem [shape: f32[2,1,64], index: 4, kind: input, shape index: {}]
  %s5 = inlined_call_operand.vmem [shape: bf16[2,64,8], index: 5, kind: input, shape index: {}]
  %s6 = inlined_call_operand.vmem [shape: f32[2,1,8], index: 6, kind: input, shape index: {}]
  %s7 = inlined_call_operand.vmem [shape: f32[2,8,8], index: 7, kind: output, shape index: {}]
  %s8 = sld [smem:[#allocation0]]
  $region61: #{prefnet_forward.1} parent=0
    _
  %s10 = ssub.s32 1, %s8
  %s11 = scalar_select 0, %s10, %s8
  loop: start=0, step=1, limit=4
  $region2: #{prefnet_forward.1} parent=0 // loop_pre_header
    _
  $region3: #{prefnet_forward.1} parent=0 // loop_header
    %s13 = sphi 0, %s17
    %p14 = scmp.ge.s32.totalorder %s13, 4
    %s20 = sphi 0, %s32
    %s21 = sphi 0, %s28
    %s22 = sphi 0, %s20
    %s23 = sphi 0, %s21
    %s24 = sphi 0, %s22
    %s25 = sphi 0, %s23
    %s37 = sphi 0, %s39
    %s40 = sphi 0, %s37
    %s41 = sphi 0, %s40
    %s57 = sphi 0, %s41
    %s63 = sphi 0, %s65
    %s66 = sphi 0, %s63
    %s67 = sphi 0, %s66
    %s83 = sphi 0, %s67
    %s89 = sphi 0, %s91
    %s92 = sphi 0, %s89
    %s93 = sphi 0, %s92
    %s109 = sphi 0, %s93
    %s115 = sphi 0, %s117
    %s118 = sphi 0, %s115
    %s119 = sphi 0, %s118
    %s135 = sphi 0, %s119
    %s141 = sphi 0, %s143
    %s144 = sphi 0, %s141
    %s145 = sphi 0, %s144
    %s161 = sphi 0, %s145
    %s167 = sphi 0, %s169
    %s170 = sphi 0, %s167
    %s171 = sphi 0, %s170
    %s187 = sphi 0, %s171
    %s193 = sphi 0, %s195
    %s196 = sphi 0, %s193
    %s197 = sphi 0, %s196
    %s213 = sphi 0, %s197
    %s221 = sphi 0, %s223
    %s224 = sphi 0, %s221
    %s225 = sphi 0, %s224
    %s241 = sphi 0, %s225
  $region4: #{prefnet_forward.1} parent=0 // loop_header_branch
    %16 = sbr.rel (%p14) target = $region8
  $region5: #{prefnet_forward.1} parent=0 // loop_body
    %s18 = ssub.s32 %s13, 1
    %s19 = ssub.s32 %s13, 2
    %s26 = sadd.s32 1, %s21
    %p27 = scmp.ge.s32.totalorder %s26, 1
    %s28 = scalar_select %p27, 0, %s26
    %s29 = sadd.s32 1, %s20
    %s30 = scalar_select %p27, %s29, %s20
    %p31 = scmp.ge.s32.totalorder %s30, 2
    %s32 = scalar_select %p31, 0, %s30
    %s33 = ssub.s32 %s20, %s32
    %s34 = ssub.s32 %s21, %s28
    %s35 = sor.u32 %s33, %s34
    %p36 = scmp.eq.s32.totalorder %s35, 0
    %s38 = sadd.s32 %s37, 1
    %s39 = scalar_select %p36, %s37, %s38
    %p42 = pneg %p36
    %p43 = scmp.eq.s32.totalorder %s13, 1
    %p44 = por %p42, %p43
    %p45 = scmp.ne.s32.totalorder %s37, %s40
    %p46 = scmp.eq.s32.totalorder %s13, 0
    %p47 = por %p45, %p46
    %p48 = scmp.ne.s32.totalorder %s37, %s40
    %p49 = scmp.eq.s32.totalorder %s18, 1
    %p50 = por %p48, %p49
    %p51 = scmp.ne.s32.totalorder %s40, %s41
    %p52 = scmp.eq.s32.totalorder %s18, 0
    %p53 = por %p51, %p52
    %p54 = scmp.ne.s32.totalorder %s40, %s41
    %p55 = scmp.eq.s32.totalorder %s19, 1
    %p56 = por %p54, %p55
    %p58 = scmp.ne.s32.totalorder %s41, %s57
    %p59 = scmp.eq.s32.totalorder %s19, 0
    %p60 = por %p58, %p59
    %s61 = ssub.s32 %s20, %s32
    %p62 = scmp.eq.s32.totalorder %s61, 0
    %s64 = sadd.s32 %s63, 1
    %s65 = scalar_select %p62, %s63, %s64
    %p68 = pneg %p62
    %p69 = scmp.eq.s32.totalorder %s13, 1
    %p70 = por %p68, %p69
    %p71 = scmp.ne.s32.totalorder %s63, %s66
    %p72 = scmp.eq.s32.totalorder %s13, 0
    %p73 = por %p71, %p72
    %p74 = scmp.ne.s32.totalorder %s63, %s66
    %p75 = scmp.eq.s32.totalorder %s18, 1
    %p76 = por %p74, %p75
    %p77 = scmp.ne.s32.totalorder %s66, %s67
    %p78 = scmp.eq.s32.totalorder %s18, 0
    %p79 = por %p77, %p78
    %p80 = scmp.ne.s32.totalorder %s66, %s67
    %p81 = scmp.eq.s32.totalorder %s19, 1
    %p82 = por %p80, %p81
    %p84 = scmp.ne.s32.totalorder %s67, %s83
    %p85 = scmp.eq.s32.totalorder %s19, 0
    %p86 = por %p84, %p85
    %s87 = ssub.s32 %s20, %s32
    %p88 = scmp.eq.s32.totalorder %s87, 0
    %s90 = sadd.s32 %s89, 1
    %s91 = scalar_select %p88, %s89, %s90
    %p94 = pneg %p88
    %p95 = scmp.eq.s32.totalorder %s13, 1
    %p96 = por %p94, %p95
    %p97 = scmp.ne.s32.totalorder %s89, %s92
    %p98 = scmp.eq.s32.totalorder %s13, 0
    %p99 = por %p97, %p98
    %p100 = scmp.ne.s32.totalorder %s89, %s92
    %p101 = scmp.eq.s32.totalorder %s18, 1
    %p102 = por %p100, %p101
    %p103 = scmp.ne.s32.totalorder %s92, %s93
    %p104 = scmp.eq.s32.totalorder %s18, 0
    %p105 = por %p103, %p104
    %p106 = scmp.ne.s32.totalorder %s92, %s93
    %p107 = scmp.eq.s32.totalorder %s19, 1
    %p108 = por %p106, %p107
    %p110 = scmp.ne.s32.totalorder %s93, %s109
    %p111 = scmp.eq.s32.totalorder %s19, 0
    %p112 = por %p110, %p111
    %s113 = ssub.s32 %s20, %s32
    %p114 = scmp.eq.s32.totalorder %s113, 0
    %s116 = sadd.s32 %s115, 1
    %s117 = scalar_select %p114, %s115, %s116
    %p120 = pneg %p114
    %p121 = scmp.eq.s32.totalorder %s13, 1
    %p122 = por %p120, %p121
    %p123 = scmp.ne.s32.totalorder %s115, %s118
    %p124 = scmp.eq.s32.totalorder %s13, 0
    %p125 = por %p123, %p124
    %p126 = scmp.ne.s32.totalorder %s115, %s118
    %p127 = scmp.eq.s32.totalorder %s18, 1
    %p128 = por %p126, %p127
    %p129 = scmp.ne.s32.totalorder %s118, %s119
    %p130 = scmp.eq.s32.totalorder %s18, 0
    %p131 = por %p129, %p130
    %p132 = scmp.ne.s32.totalorder %s118, %s119
    %p133 = scmp.eq.s32.totalorder %s19, 1
    %p134 = por %p132, %p133
    %p136 = scmp.ne.s32.totalorder %s119, %s135
    %p137 = scmp.eq.s32.totalorder %s19, 0
    %p138 = por %p136, %p137
    %s139 = ssub.s32 %s20, %s32
    %p140 = scmp.eq.s32.totalorder %s139, 0
    %s142 = sadd.s32 %s141, 1
    %s143 = scalar_select %p140, %s141, %s142
    %p146 = pneg %p140
    %p147 = scmp.eq.s32.totalorder %s13, 1
    %p148 = por %p146, %p147
    %p149 = scmp.ne.s32.totalorder %s141, %s144
    %p150 = scmp.eq.s32.totalorder %s13, 0
    %p151 = por %p149, %p150
    %p152 = scmp.ne.s32.totalorder %s141, %s144
    %p153 = scmp.eq.s32.totalorder %s18, 1
    %p154 = por %p152, %p153
    %p155 = scmp.ne.s32.totalorder %s144, %s145
    %p156 = scmp.eq.s32.totalorder %s18, 0
    %p157 = por %p155, %p156
    %p158 = scmp.ne.s32.totalorder %s144, %s145
    %p159 = scmp.eq.s32.totalorder %s19, 1
    %p160 = por %p158, %p159
    %p162 = scmp.ne.s32.totalorder %s145, %s161
    %p163 = scmp.eq.s32.totalorder %s19, 0
    %p164 = por %p162, %p163
    %s165 = ssub.s32 %s20, %s32
    %p166 = scmp.eq.s32.totalorder %s165, 0
    %s168 = sadd.s32 %s167, 1
    %s169 = scalar_select %p166, %s167, %s168
    %p172 = pneg %p166
    %p173 = scmp.eq.s32.totalorder %s13, 1
    %p174 = por %p172, %p173
    %p175 = scmp.ne.s32.totalorder %s167, %s170
    %p176 = scmp.eq.s32.totalorder %s13, 0
    %p177 = por %p175, %p176
    %p178 = scmp.ne.s32.totalorder %s167, %s170
    %p179 = scmp.eq.s32.totalorder %s18, 1
    %p180 = por %p178, %p179
    %p181 = scmp.ne.s32.totalorder %s170, %s171
    %p182 = scmp.eq.s32.totalorder %s18, 0
    %p183 = por %p181, %p182
    %p184 = scmp.ne.s32.totalorder %s170, %s171
    %p185 = scmp.eq.s32.totalorder %s19, 1
    %p186 = por %p184, %p185
    %p188 = scmp.ne.s32.totalorder %s171, %s187
    %p189 = scmp.eq.s32.totalorder %s19, 0
    %p190 = por %p188, %p189
    %s191 = ssub.s32 %s20, %s32
    %p192 = scmp.eq.s32.totalorder %s191, 0
    %s194 = sadd.s32 %s193, 1
    %s195 = scalar_select %p192, %s193, %s194
    %p198 = pneg %p192
    %p199 = scmp.eq.s32.totalorder %s13, 1
    %p200 = por %p198, %p199
    %p201 = scmp.ne.s32.totalorder %s193, %s196
    %p202 = scmp.eq.s32.totalorder %s13, 0
    %p203 = por %p201, %p202
    %p204 = scmp.ne.s32.totalorder %s193, %s196
    %p205 = scmp.eq.s32.totalorder %s18, 1
    %p206 = por %p204, %p205
    %p207 = scmp.ne.s32.totalorder %s196, %s197
    %p208 = scmp.eq.s32.totalorder %s18, 0
    %p209 = por %p207, %p208
    %p210 = scmp.ne.s32.totalorder %s196, %s197
    %p211 = scmp.eq.s32.totalorder %s19, 1
    %p212 = por %p210, %p211
    %p214 = scmp.ne.s32.totalorder %s197, %s213
    %p215 = scmp.eq.s32.totalorder %s19, 0
    %p216 = por %p214, %p215
    %s217 = ssub.s32 %s20, %s32
    %s218 = ssub.s32 %s21, %s28
    %s219 = sor.u32 %s217, %s218
    %p220 = scmp.eq.s32.totalorder %s219, 0
    %s222 = sadd.s32 %s221, 1
    %s223 = scalar_select %p220, %s221, %s222
    %p226 = pneg %p220
    %p227 = scmp.eq.s32.totalorder %s13, 1
    %p228 = por %p226, %p227
    %p229 = scmp.ne.s32.totalorder %s221, %s224
    %p230 = scmp.eq.s32.totalorder %s13, 0
    %p231 = por %p229, %p230
    %p232 = scmp.ne.s32.totalorder %s221, %s224
    %p233 = scmp.eq.s32.totalorder %s18, 1
    %p234 = por %p232, %p233
    %p235 = scmp.ne.s32.totalorder %s224, %s225
    %p236 = scmp.eq.s32.totalorder %s18, 0
    %p237 = por %p235, %p236
    %p238 = scmp.ne.s32.totalorder %s224, %s225
    %p239 = scmp.eq.s32.totalorder %s19, 1
    %p240 = por %p238, %p239
    %p242 = scmp.ne.s32.totalorder %s225, %s241
    %p243 = scmp.eq.s32.totalorder %s19, 0
    %p244 = por %p242, %p243
    %p245 = scmp.le.s32.totalorder 1, %s13
    %p246 = scmp.lt.s32.totalorder %s13, 3
    %p247 = pnand %p245, %p246
    %p248 = pneg %p247
    // Predicated region
    $region9: #{prefnet_forward.1} parent=5 // pred_check
      _
    $region10: #{prefnet_forward.1} parent=5 // pred_check_branch
      %250 = sbr.rel (%p247) target = $region12
    $region11: #{prefnet_forward.1} parent=5 // pred_region
      %s251 = ssub.s32 %s13, 1
    $region12: #{prefnet_forward.1} parent=5 // pred_fallthru
      _
    %p252 = scmp.lt.s32.totalorder %s13, 2
    // Predicated region
    $region13: #{prefnet_forward.1} parent=5 // pred_check
      %p253 = pneg %p252
    $region14: #{prefnet_forward.1} parent=5 // pred_check_branch
      %255 = sbr.rel (%p253) target = $region16
    $region15: #{prefnet_forward.1} parent=5 // pred_region
      // Predicated region
      $region17: #{prefnet_forward.1} parent=15 // pred_check
        %p256 = pneg %p47
      $region18: #{prefnet_forward.1} parent=15 // pred_check_branch
        %258 = sbr.rel (%p256) target = $region20
      $region19: #{prefnet_forward.1} parent=15 // pred_region
        %p259 = scmp.lt.s32.totalorder %s20, 1
        %s260 = scalar_select %p259, %s20, 1
        %p261 = scmp.lt.s32.totalorder %s21, 0
        %s262 = scalar_select %p261, %s21, 0
        %s263 = sadd.s32 %s262, %s260
        %s264 = smul.addr %s263, 4
        %s265 = scalar_lea.vmem %s0, %s264
      $region20: #{prefnet_forward.1} parent=15 // pred_fallthru
        _
      // Predicated region
      $region21: #{prefnet_forward.1} parent=15 // pred_check
        %p266 = pneg %p73
      $region22: #{prefnet_forward.1} parent=15 // pred_check_branch
        %268 = sbr.rel (%p266) target = $region24
      $region23: #{prefnet_forward.1} parent=15 // pred_region
        %p269 = scmp.lt.s32.totalorder %s20, 1
        %s270 = scalar_select %p269, %s20, 1
        %s271 = smul.addr %s270, 4
        %s272 = smul.addr %s271, 4
        %s273 = scalar_lea.vmem %s1, %s272
      $region24: #{prefnet_forward.1} parent=15 // pred_fallthru
        _
      // Predicated region
      $region25: #{prefnet_forward.1} parent=15 // pred_check
        %p274 = pneg %p99
      $region26: #{prefnet_forward.1} parent=15 // pred_check_branch
        %276 = sbr.rel (%p274) target = $region28
      $region27: #{prefnet_forward.1} parent=15 // pred_region
        %p277 = scmp.lt.s32.totalorder %s20, 1
        %s278 = scalar_select %p277, %s20, 1
        %s279 = scalar_lea.vmem %s2, %s278
      $region28: #{prefnet_forward.1} parent=15 // pred_fallthru
        _
      // Predicated region
      $region29: #{prefnet_forward.1} parent=15 // pred_check
        %p280 = pneg %p125
      $region30: #{prefnet_forward.1} parent=15 // pred_check_branch
        %282 = sbr.rel (%p280) target = $region32
      $region31: #{prefnet_forward.1} parent=15 // pred_region
        %p283 = scmp.lt.s32.totalorder %s20, 1
        %s284 = scalar_select %p283, %s20, 1
        %s285 = smul.addr %s284, 16
        %s286 = smul.addr %s285, 4
        %s287 = scalar_lea.vmem %s3, %s286
      $region32: #{prefnet_forward.1} parent=15 // pred_fallthru
        _
      // Predicated region
      $region33: #{prefnet_forward.1} parent=15 // pred_check
        %p288 = pneg %p151
      $region34: #{prefnet_forward.1} parent=15 // pred_check_branch
        %290 = sbr.rel (%p288) target = $region36
      $region35: #{prefnet_forward.1} parent=15 // pred_region
        %p291 = scmp.lt.s32.totalorder %s20, 1
        %s292 = scalar_select %p291, %s20, 1
        %s293 = scalar_lea.vmem %s4, %s292
      $region36: #{prefnet_forward.1} parent=15 // pred_fallthru
        _
      // Predicated region
      $region37: #{prefnet_forward.1} parent=15 // pred_check
        %p294 = pneg %p177
      $region38: #{prefnet_forward.1} parent=15 // pred_check_branch
        %296 = sbr.rel (%p294) target = $region40
      $region39: #{prefnet_forward.1} parent=15 // pred_region
        %p297 = scmp.lt.s32.totalorder %s20, 1
        %s298 = scalar_select %p297, %s20, 1
        %s299 = smul.addr %s298, 8
        %s300 = smul.addr %s299, 4
        %s301 = scalar_lea.vmem %s5, %s300
      $region40: #{prefnet_forward.1} parent=15 // pred_fallthru
        _
      // Predicated region
      $region41: #{prefnet_forward.1} parent=15 // pred_check
        %p302 = pneg %p203
      $region42: #{prefnet_forward.1} parent=15 // pred_check_branch
        %304 = sbr.rel (%p302) target = $region44
      $region43: #{prefnet_forward.1} parent=15 // pred_region
        %p305 = scmp.lt.s32.totalorder %s20, 1
        %s306 = scalar_select %p305, %s20, 1
        %s307 = scalar_lea.vmem %s6, %s306
      $region44: #{prefnet_forward.1} parent=15 // pred_fallthru
        _
    $region16: #{prefnet_forward.1} parent=5 // pred_fallthru
      _
    %p308 = scmp.le.s32.totalorder 1, %s13
    %p309 = scmp.lt.s32.totalorder %s13, 3
    %p310 = pnand %p308, %p309
    %p311 = pneg %p310
    // Predicated region
    $region45: #{prefnet_forward.1} parent=5 // pred_check
      _
    $region46: #{prefnet_forward.1} parent=5 // pred_check_branch
      %313 = sbr.rel (%p310) target = $region48
    $region47: #{prefnet_forward.1} parent=5 // pred_region
      %s314 = ssub.s32 %s13, 1
      %p315 = scmp.lt.s32.totalorder %s22, 1
      %s316 = scalar_select %p315, %s22, 1
      %p317 = scmp.lt.s32.totalorder %s23, 0
      %s318 = scalar_select %p317, %s23, 0
      %s319 = sadd.s32 %s318, %s316
      %s320 = smul.addr %s319, 4
      %s321 = scalar_lea.vmem %s0, %s320
      %p322 = pneg %p53
      %p323 = pneg %p50
      %p324 = scmp.lt.s32.totalorder %s22, 1
      %s325 = scalar_select %p324, %s22, 1
      %s326 = smul.addr %s325, 4
      %s327 = smul.addr %s326, 4
      %s328 = scalar_lea.vmem %s1, %s327
      %p329 = pneg %p79
      %p330 = pneg %p76
      %p331 = scmp.lt.s32.totalorder %s22, 1
      %s332 = scalar_select %p331, %s22, 1
      %s333 = scalar_lea.vmem %s2, %s332
      %p334 = pneg %p105
      %p335 = pneg %p102
      %p336 = scmp.lt.s32.totalorder %s22, 1
      %s337 = scalar_select %p336, %s22, 1
      %s338 = smul.addr %s337, 16
      %s339 = smul.addr %s338, 4
      %s340 = scalar_lea.vmem %s3, %s339
      %p341 = pneg %p131
      %p342 = pneg %p128
      %p343 = scmp.lt.s32.totalorder %s22, 1
      %s344 = scalar_select %p343, %s22, 1
      %s345 = scalar_lea.vmem %s4, %s344
      %p346 = pneg %p157
      %p347 = pneg %p154
      %p348 = scmp.lt.s32.totalorder %s22, 1
      %s349 = scalar_select %p348, %s22, 1
      %s350 = smul.addr %s349, 8
      %s351 = smul.addr %s350, 4
      %s352 = scalar_lea.vmem %s5, %s351
      %p353 = pneg %p183
      %p354 = pneg %p180
      %p355 = scmp.lt.s32.totalorder %s22, 1
      %s356 = scalar_select %p355, %s22, 1
      %s357 = scalar_lea.vmem %s6, %s356
      %p358 = pneg %p209
      %p359 = pneg %p206
      %p360 = pneg %p237
      %p361 = pneg %p234
      %p362 = scmp.lt.s32.totalorder %s22, 1
      %s363 = scalar_select %p362, %s22, 1
      %p364 = scmp.lt.s32.totalorder %s23, 0
      %s365 = scalar_select %p364, %s23, 0
      %s366 = sadd.s32 %s365, %s363
      %s367 = smul.addr %s366, 8
      %s368 = scalar_lea.vmem %s7, %s367
      %p369 = scmp.lt.s32.totalorder %s22, 1
      %s370 = scalar_select %p369, %s22, 1
      %p371 = scmp.lt.s32.totalorder %s23, 0
      %s372 = scalar_select %p371, %s23, 0
      %s373 = sadd.s32 %s372, %s370
      %s374 = smul.addr %s373, 4
      %s375 = scalar_lea.vmem %s0, %s374
      %p376 = scmp.lt.s32.totalorder %s22, 1
      %s377 = scalar_select %p376, %s22, 1
      %s378 = smul.addr %s377, 4
      %s379 = smul.addr %s378, 4
      %s380 = scalar_lea.vmem %s1, %s379
      %p381 = scmp.lt.s32.totalorder %s22, 1
      %s382 = scalar_select %p381, %s22, 1
      %s383 = scalar_lea.vmem %s2, %s382
      %p384 = scmp.lt.s32.totalorder %s22, 1
      %s385 = scalar_select %p384, %s22, 1
      %s386 = smul.addr %s385, 16
      %s387 = smul.addr %s386, 4
      %s388 = scalar_lea.vmem %s3, %s387
      %p389 = scmp.lt.s32.totalorder %s22, 1
      %s390 = scalar_select %p389, %s22, 1
      %s391 = scalar_lea.vmem %s4, %s390
      %p392 = scmp.lt.s32.totalorder %s22, 1
      %s393 = scalar_select %p392, %s22, 1
      %s394 = smul.addr %s393, 8
      %s395 = smul.addr %s394, 4
      %s396 = scalar_lea.vmem %s5, %s395
      %p397 = scmp.lt.s32.totalorder %s22, 1
      %s398 = scalar_select %p397, %s22, 1
      %s399 = scalar_lea.vmem %s6, %s398
      %p400 = scmp.lt.s32.totalorder %s22, 1
      %s401 = scalar_select %p400, %s22, 1
      %p402 = scmp.lt.s32.totalorder %s23, 0
      %s403 = scalar_select %p402, %s23, 0
      %s404 = sadd.s32 %s403, %s401
      %s405 = smul.addr %s404, 8
      %s406 = scalar_lea.vmem %s7, %s405
      %v408 = vld [vmem:[%s375] sm:$0xf]
      %v409 = vld [vmem:[%s380] sm:$0xf]
      %v410 = vld [vmem:[%s380 + $0x4] sm:$0xf]
      %v411 = vld [vmem:[%s380 + $0x8] sm:$0xf]
      %v412 = vld [vmem:[%s380 + $0xc] sm:$0xf]
      %v413 = vld [vmem:[%s383] sm:$0x1]
      %v415 = vlaneseq
      %v416 = vshrl.u32 %v415, 7
      %v417 = vsub.s32 0, %v416
      %v418 = vrot.slane %v413, %v417
      %v424 = vunpack.c.l.b16 %v409
      %v425 = vunpack.c.l.b16 %v410
      %v426 = vunpack.c.l.b16 %v411
      %v427 = vunpack.c.l.b16 %v412
      %v428 = vpack.c.b16 %v425, %v424
      %v429 = vpack.c.b16 %v427, %v426
      %vm432 = vcmask 261120
      %v434 = vsel %vm432, %v408, 0
      %436 = vmatprep.subr.bf16.mxu0 0
      %437 = vmatpush1.bf16.msra.mxu0 %v428
      %438 = vmatprep.subr.bf16.mxu0 0
      %439 = vmatpush1.bf16.msra.mxu0 %v429
      %440 = vmatprep.subr.bf16.mxu0 0
      %441 = vmatpush1.bf16.msra.mxu0 0
      %442 = vmatprep.subr.bf16.mxu0 0
      %443 = vmatpush1.bf16.msra.mxu0 0
      %444 = vmatprep.subr.bf16.mxu0 0
      %445 = vmatpush1.bf16.msra.mxu0 0
      %446 = vmatprep.subr.bf16.mxu0 0
      %447 = vmatpush1.bf16.msra.mxu0 0
      %448 = vmatprep.subr.bf16.mxu0 0
      %449 = vmatpush1.bf16.msra.mxu0 0
      %450 = vmatprep.subr.bf16.mxu0 0
      %451 = vmatpush1.bf16.msra.mxu0 0
      %452 = vmatprep.subr.bf16.mxu0 0
      %453 = vmatpush1.bf16.msra.mxu0 0
      %454 = vmatprep.subr.bf16.mxu0 0
      %455 = vmatpush1.bf16.msra.mxu0 0
      %456 = vmatprep.subr.bf16.mxu0 0
      %457 = vmatpush1.bf16.msra.mxu0 0
      %458 = vmatprep.subr.bf16.mxu0 0
      %459 = vmatpush1.bf16.msra.mxu0 0
      %460 = vmatprep.subr.bf16.mxu0 0
      %461 = vmatpush1.bf16.msra.mxu0 0
      %462 = vmatprep.subr.bf16.mxu0 0
      %463 = vmatpush1.bf16.msra.mxu0 0
      %464 = vmatprep.subr.bf16.mxu0 0
      %465 = vmatpush1.bf16.msra.mxu0 0
      %466 = vmatprep.subr.bf16.mxu0 0
      %467 = vmatpush1.bf16.msra.mxu0 0
      %468 = vmatprep.mubr.bf16.mxu0 0
      %469 = vmatmul.mubr.bf16.gmra.mrb[0].mxu0 %v434
      %v470 = vpop.f32.mrb[0].mxu0
      %v471 = vadd.f32 %v418, %v470
      %v472 = vpop.f32.mrb[0].mxu0
      %v473 = vpop.f32.mrb[0].mxu0
      %v474 = vpop.f32.mrb[0].mxu0
      %475 = vdwg.mxu0
      %v476 = vtanh.pop %v471
      %v477 = vpack.c.bf16 %v476, %v476
      %v478 = vld [vmem:[%s388] sm:$0xf]
      %v479 = vld [vmem:[%s388 + $0x4] sm:$0xf]
      %v480 = vld [vmem:[%s388 + $0x8] sm:$0xf]
      %v481 = vld [vmem:[%s388 + $0xc] sm:$0xf]
      %v482 = vld [vmem:[%s388 + $0x10] sm:$0xf]
      %v483 = vld [vmem:[%s388 + $0x14] sm:$0xf]
      %v484 = vld [vmem:[%s388 + $0x18] sm:$0xf]
      %v485 = vld [vmem:[%s388 + $0x1c] sm:$0xf]
      %v486 = vld [vmem:[%s388 + $0x20] sm:$0xf]
      %v487 = vld [vmem:[%s388 + $0x24] sm:$0xf]
      %v488 = vld [vmem:[%s388 + $0x28] sm:$0xf]
      %v489 = vld [vmem:[%s388 + $0x2c] sm:$0xf]
      %v490 = vld [vmem:[%s388 + $0x30] sm:$0xf]
      %v491 = vld [vmem:[%s388 + $0x34] sm:$0xf]
      %v492 = vld [vmem:[%s388 + $0x38] sm:$0xf]
      %v493 = vld [vmem:[%s388 + $0x3c] sm:$0xf]
      %v494 = vld [vmem:[%s391] sm:$0x1]
      %v496 = vlaneseq
      %v497 = vshrl.u32 %v496, 7
      %v498 = vsub.s32 0, %v497
      %v499 = vrot.slane %v494, %v498
      %v517 = vunpack.c.l.b16 %v478
      %v518 = vunpack.c.l.b16 %v479
      %v519 = vunpack.c.l.b16 %v480
      %v520 = vunpack.c.l.b16 %v481
      %v521 = vunpack.c.l.b16 %v482
      %v522 = vunpack.c.l.b16 %v483
      %v523 = vunpack.c.l.b16 %v484
      %v524 = vunpack.c.l.b16 %v485
      %v525 = vunpack.c.l.b16 %v486
      %v526 = vunpack.c.l.b16 %v487
      %v527 = vunpack.c.l.b16 %v488
      %v528 = vunpack.c.l.b16 %v489
      %v529 = vunpack.c.l.b16 %v490
      %v530 = vunpack.c.l.b16 %v491
      %v531 = vunpack.c.l.b16 %v492
      %v532 = vunpack.c.l.b16 %v493
      %v533 = vpack.c.b16 %v518, %v517
      %v534 = vpack.c.b16 %v520, %v519
      %v535 = vpack.c.b16 %v522, %v521
      %v536 = vpack.c.b16 %v524, %v523
      %v537 = vpack.c.b16 %v526, %v525
      %v538 = vpack.c.b16 %v528, %v527
      %v539 = vpack.c.b16 %v530, %v529
      %v540 = vpack.c.b16 %v532, %v531
      %549 = vmatprep.subr.bf16.mxu0 0
      %550 = vmatpush1.bf16.msra.mxu0 %v533
      %551 = vmatprep.subr.bf16.mxu0 0
      %552 = vmatpush1.bf16.msra.mxu0 %v534
      %553 = vmatprep.subr.bf16.mxu0 0
      %554 = vmatpush1.bf16.msra.mxu0 %v535
      %555 = vmatprep.subr.bf16.mxu0 0
      %556 = vmatpush1.bf16.msra.mxu0 %v536
      %557 = vmatprep.subr.bf16.mxu0 0
      %558 = vmatpush1.bf16.msra.mxu0 %v537
      %559 = vmatprep.subr.bf16.mxu0 0
      %560 = vmatpush1.bf16.msra.mxu0 %v538
      %561 = vmatprep.subr.bf16.mxu0 0
      %562 = vmatpush1.bf16.msra.mxu0 %v539
      %563 = vmatprep.subr.bf16.mxu0 0
      %564 = vmatpush1.bf16.msra.mxu0 %v540
      %565 = vmatprep.subr.bf16.mxu0 0
      %566 = vmatpush1.bf16.msra.mxu0 0
      %567 = vmatprep.subr.bf16.mxu0 0
      %568 = vmatpush1.bf16.msra.mxu0 0
      %569 = vmatprep.subr.bf16.mxu0 0
      %570 = vmatpush1.bf16.msra.mxu0 0
      %571 = vmatprep.subr.bf16.mxu0 0
      %572 = vmatpush1.bf16.msra.mxu0 0
      %573 = vmatprep.subr.bf16.mxu0 0
      %574 = vmatpush1.bf16.msra.mxu0 0
      %575 = vmatprep.subr.bf16.mxu0 0
      %576 = vmatpush1.bf16.msra.mxu0 0
      %577 = vmatprep.subr.bf16.mxu0 0
      %578 = vmatpush1.bf16.msra.mxu0 0
      %579 = vmatprep.subr.bf16.mxu0 0
      %580 = vmatpush1.bf16.msra.mxu0 0
      %581 = vmatprep.mubr.bf16.mxu0 0
      %582 = vmatmul.mubr.bf16.gmra.mrb[0].mxu0 %v477
      %v583 = vpop.f32.mrb[0].mxu0
      %v584 = vadd.f32 %v499, %v583
      %v585 = vpop.f32.mrb[0].mxu0
      %v586 = vpop.f32.mrb[0].mxu0
      %v587 = vpop.f32.mrb[0].mxu0
      %588 = vdwg.mxu0
      %v589 = vtanh.pop %v584
      %v590 = vpack.c.bf16 %v589, %v589
      %v591 = vld [vmem:[%s396] sm:$0xf]
      %v592 = vld [vmem:[%s396 + $0x4] sm:$0xf]
      %v593 = vld [vmem:[%s396 + $0x8] sm:$0xf]
      %v594 = vld [vmem:[%s396 + $0xc] sm:$0xf]
      %v595 = vld [vmem:[%s396 + $0x10] sm:$0xf]
      %v596 = vld [vmem:[%s396 + $0x14] sm:$0xf]
      %v597 = vld [vmem:[%s396 + $0x18] sm:$0xf]
      %v598 = vld [vmem:[%s396 + $0x1c] sm:$0xf]
      %v599 = vld [vmem:[%s399] sm:$0x1]
      %v601 = vlaneseq
      %v602 = vshrl.u32 %v601, 7
      %v603 = vsub.s32 0, %v602
      %v604 = vrot.slane %v599, %v603
      %v614 = vunpack.c.l.b16 %v591
      %v615 = vunpack.c.l.b16 %v592
      %v616 = vunpack.c.l.b16 %v593
      %v617 = vunpack.c.l.b16 %v594
      %v618 = vunpack.c.l.b16 %v595
      %v619 = vunpack.c.l.b16 %v596
      %v620 = vunpack.c.l.b16 %v597
      %v621 = vunpack.c.l.b16 %v598
      %v622 = vpack.c.b16 %v615, %v614
      %v623 = vpack.c.b16 %v617, %v616
      %v624 = vpack.c.b16 %v619, %v618
      %v625 = vpack.c.b16 %v621, %v620
      %vm630 = vcmask 523264
      %v632 = vsel %vm630, %v590, 0
      %634 = vmatprep.subr.bf16.mxu0 0
      %635 = vmatpush1.bf16.msra.mxu0 %v622
      %636 = vmatprep.subr.bf16.mxu0 0
      %637 = vmatpush1.bf16.msra.mxu0 %v623
      %638 = vmatprep.subr.bf16.mxu0 0
      %639 = vmatpush1.bf16.msra.mxu0 %v624
      %640 = vmatprep.subr.bf16.mxu0 0
      %641 = vmatpush1.bf16.msra.mxu0 %v625
      %642 = vmatprep.subr.bf16.mxu0 0
      %643 = vmatpush1.bf16.msra.mxu0 0
      %644 = vmatprep.subr.bf16.mxu0 0
      %645 = vmatpush1.bf16.msra.mxu0 0
      %646 = vmatprep.subr.bf16.mxu0 0
      %647 = vmatpush1.bf16.msra.mxu0 0
      %648 = vmatprep.subr.bf16.mxu0 0
      %649 = vmatpush1.bf16.msra.mxu0 0
      %650 = vmatprep.subr.bf16.mxu0 0
      %651 = vmatpush1.bf16.msra.mxu0 0
      %652 = vmatprep.subr.bf16.mxu0 0
      %653 = vmatpush1.bf16.msra.mxu0 0
      %654 = vmatprep.subr.bf16.mxu0 0
      %655 = vmatpush1.bf16.msra.mxu0 0
      %656 = vmatprep.subr.bf16.mxu0 0
      %657 = vmatpush1.bf16.msra.mxu0 0
      %658 = vmatprep.subr.bf16.mxu0 0
      %659 = vmatpush1.bf16.msra.mxu0 0
      %660 = vmatprep.subr.bf16.mxu0 0
      %661 = vmatpush1.bf16.msra.mxu0 0
      %662 = vmatprep.subr.bf16.mxu0 0
      %663 = vmatpush1.bf16.msra.mxu0 0
      %664 = vmatprep.subr.bf16.mxu0 0
      %665 = vmatpush1.bf16.msra.mxu0 0
      %666 = vmatprep.mubr.bf16.mxu0 0
      %667 = vmatmul.mubr.bf16.gmra.mrb[0].mxu0 %v632
      %v668 = vpop.f32.mrb[0].mxu0
      %v669 = vadd.f32 %v604, %v668
      %v670 = vpop.f32.mrb[0].mxu0
      %v671 = vpop.f32.mrb[0].mxu0
      %v672 = vpop.f32.mrb[0].mxu0
      %673 = vdwg.mxu0
      %vm674 = vcmask 64512
      %675 = vst.msk [vmem:[%s406] sm:$0xff] %vm674, %v669
      %p676 = scmp.lt.s32.totalorder %s22, 1
      %s677 = scalar_select %p676, %s22, 1
      %p678 = scmp.lt.s32.totalorder %s23, 0
      %s679 = scalar_select %p678, %s23, 0
      %s680 = sadd.s32 %s679, %s677
      %s681 = smul.addr %s680, 8
      %s682 = scalar_lea.vmem %s7, %s681
      // Predicated region
      $region49: #{prefnet_forward.1} parent=47 // pred_check
        %p683 = pneg %p234
      $region50: #{prefnet_forward.1} parent=47 // pred_check_branch
        %685 = sbr.rel (%p683) target = $region52
      $region51: #{prefnet_forward.1} parent=47 // pred_region
        _
      $region52: #{prefnet_forward.1} parent=47 // pred_fallthru
        _
    $region48: #{prefnet_forward.1} parent=5 // pred_fallthru
      _
    %p686 = scmp.le.s32.totalorder 2, %s13
    // Predicated region
    $region53: #{prefnet_forward.1} parent=5 // pred_check
      %p687 = pneg %p686
    $region54: #{prefnet_forward.1} parent=5 // pred_check_branch
      %689 = sbr.rel (%p687) target = $region56
    $region55: #{prefnet_forward.1} parent=5 // pred_region
      %s690 = ssub.s32 %s13, 2
      // Predicated region
      $region57: #{prefnet_forward.1} parent=55 // pred_check
        %p691 = pneg %p240
      $region58: #{prefnet_forward.1} parent=55 // pred_check_branch
        %693 = sbr.rel (%p691) target = $region60
      $region59: #{prefnet_forward.1} parent=55 // pred_region
        %p694 = scmp.lt.s32.totalorder %s24, 1
        %s695 = scalar_select %p694, %s24, 1
        %p696 = scmp.lt.s32.totalorder %s25, 0
        %s697 = scalar_select %p696, %s25, 0
        %s698 = sadd.s32 %s697, %s695
        %s699 = smul.addr %s698, 8
        %s700 = scalar_lea.vmem %s7, %s699
      $region60: #{prefnet_forward.1} parent=55 // pred_fallthru
        _
    $region56: #{prefnet_forward.1} parent=5 // pred_fallthru
      _
  $region6: #{prefnet_forward.1} parent=0 // loop_footer
    %s17 = sadd.s32 1, %s13
  $region7: #{prefnet_forward.1} parent=0 // loop_footer_branch
    %12 = sbr.rel target = $region3
  $region8: #{prefnet_forward.1} parent=0 // loop_exit
    _

</llo_original>
